<compile_context>
chip_gen: v7x
topology: tpu7x:2x2x1
jax: 0.10.0
libtpu: 0.0.40
codegen_flags: <defaults>
</compile_context>

<pallas_src>
import functools

import numpy as np
import jax
import jax.numpy as jnp
from jax.experimental import pallas as pl
from jax.experimental.pallas import tpu as pltpu


# ----------------------------- filter construction --------------------------

def img_gaussian(sigma: int) -> np.ndarray:
    size = 2 * sigma + 1
    g = np.zeros((size, size), dtype=np.float64)
    for x in range(-sigma, sigma + 1):
        for y in range(-sigma, sigma + 1):
            g[x + sigma, y + sigma] = np.exp(-0.5 * (x * x + y * y) / (sigma * sigma))
    return g / g.sum()


GAUSS_NP = img_gaussian(1).astype(np.float32)
LAP_E_NP = np.array([[0, 1, 0], [1, -4, 1], [0, 1, 0]], dtype=np.float32)
LAP_D_NP = np.array([[1, 1, 1], [1, -8, 1], [1, 1, 1]], dtype=np.float32)
SOB_V_NP = np.array([[-1, 0, 1], [-2, 0, 2], [-1, 0, 1]], dtype=np.float32)
SOB_H_NP = np.array([[-1, -2, -1], [0, 0, 0], [1, 2, 1]], dtype=np.float32)

_LANES = 128


# ----------------------------- VMEM sizing -----------------------------------

def _vmem_budget():
    """Per-block VMEM budget + scoped vmem limit, sized per TPU generation."""
    cap = 64 * 1024 * 1024            # conservative default (64 MiB per-core parts)
    try:
        cap = int(pltpu.get_tpu_info().vmem_capacity_bytes)
    except Exception:
        pass
    budget = min(cap * 3 // 8, 48 * 1024 * 1024)   # 128 MiB -> 48 MiB, 64 MiB -> 24 MiB
    limit = min(cap * 7 // 8, 112 * 1024 * 1024)   # 128 MiB -> 112 MiB, 64 MiB -> 56 MiB
    return budget, limit


_VMEM_BUDGET_BYTES, _VMEM_LIMIT_BYTES = _vmem_budget()


def _pick_tm(mpad, per_lane_bytes, budget_bytes):
    """Largest lane tile (multiple of 128, divisor of mpad) that fits the budget,
    preferring an even grid-step count >= 2 so a 2-TC part splits work evenly."""
    cap = max(_LANES, budget_bytes // max(per_lane_bytes, 1) // _LANES * _LANES)
    cap = min(cap, mpad)
    divs = [t for t in range(cap, _LANES - 1, -_LANES) if mpad % t == 0]
    if not divs:
        return _LANES
    if mpad >= 2 * _LANES:
        even = [t for t in divs if (mpad // t) % 2 == 0]
        if even:
            return even[0]
        multi = [t for t in divs if mpad // t >= 2]
        if multi:
            return multi[0]
    return divs[0]


# --------------------------------- kernel -----------------------------------

def _fused_kernel(planes_ref, out1q_ref, filt_ref, *, Ho2, Wo2):
    """Fused Gaussian pool + {LaplaceE, LaplaceD, SobelV, SobelH} pools.

    planes_ref : VMEM (16, Ho2+1, Wo2+1, TM)  mod-4 x mod-4 phase planes of the
                 zero-padded input; lane axis = flattened N*C image axis.
                 planes[ch*4+cw][u, v] = xpad[4u+ch, 4v+cw].
    out1q_ref  : VMEM (4, Ho2+1, Wo2+1, TM)   parity planes of the ZERO-PADDED
                 Gaussian output: q[2a+b][u, v] = pad1(GM(x))[2u+a, 2v+b].
                 Written once here, read back for stage 2, re-interleaved in XLA.
    filt_ref   : VMEM (4, Ho2, Wo2, TM)       LE, LD, SV, SH outputs.
    """
    Hq, Wq = Ho2 + 1, Wo2 + 1
    tm = out1q_ref.shape[-1]

    # ---- zero ONLY the padding border strips stage 2 reads (not the whole q) ----
    zrow = jnp.zeros((1, Wq, tm), jnp.float32)
    zcol = jnp.zeros((Hq, 1, tm), jnp.float32)
    out1q_ref[0, 0:1, :, :] = zrow        # pad row 0, read by di==0 taps
    out1q_ref[1, 0:1, :, :] = zrow
    out1q_ref[0, :, 0:1, :] = zcol        # pad col 0, read by dj==0 taps
    out1q_ref[2, :, 0:1, :] = zcol
    # (never-read strips of planes 1/2/3 are left untouched; the wrapper slices
    #  them off, so their HBM contents are irrelevant.)

    # ---- stage 1: depthwise 3x3 Gaussian, stride 2, pad 1 -----------------------
    # out1[2a+r, 2b+s] = sum_{di,dj} g[di,dj] * xpad[4a+2r+di, 4b+2s+dj]
    # Factored by symmetry:  w_c*(corner sum) + w_e*(edge sum) + w_m*center.
    w_c = float(GAUSS_NP[0, 0])
    w_e = float(GAUSS_NP[0, 1])
    w_m = float(GAUSS_NP[1, 1])

    tap_cache = {}                         # dedup the 25 distinct (th, tw) loads

    def tap(th, tw):
        key = (th, tw)
        if key not in tap_cache:
            tap_cache[key] = planes_ref[(th % 4) * 4 + (tw % 4),
                                        th // 4: th // 4 + Ho2,
                                        tw // 4: tw // 4 + Wo2, :]
        return tap_cache[key]

    for r in (0, 1):
        for s in (0, 1):
            th0, tw0 = 2 * r, 2 * s
            corner = ((tap(th0, tw0) + tap(th0, tw0 + 2)) +
                      (tap(th0 + 2, tw0) + tap(th0 + 2, tw0 + 2)))
            edge = ((tap(th0, tw0 + 1) + tap(th0 + 2, tw0 + 1)) +
                    (tap(th0 + 1, tw0) + tap(th0 + 1, tw0 + 2)))
            center = tap(th0 + 1, tw0 + 1)
            acc = w_c * corner + w_e * edge + w_m * center
            # q[1-r][1-s][u, v] = out1[2u - r, 2v - s]  => write at offset (r, s)
            out1q_ref[2 * (1 - r) + (1 - s), r:r + Ho2, s:s + Wo2, :] = acc

    # ---- stage 2: four depthwise 3x3 filters, stride 2, pad 1, on GM(x) ---------
    # outF[u, v] = sum f[di,dj] * q[di%2][dj%2][u + di//2, v + dj//2]
    # Load the 9 taps once, share them across all four filters (factored weights).
    def qtap(di, dj):
        return out1q_ref[2 * (di % 2) + (dj % 2),
                         di // 2: di // 2 + Ho2,
                         dj // 2: dj // 2 + Wo2, :]

    q00, q01, q02 = qtap(0, 0), qtap(0, 1), qtap(0, 2)
    q10, q11, q12 = qtap(1, 0), qtap(1, 1), qtap(1, 2)
    q20, q21, q22 = qtap(2, 0), qtap(2, 1), qtap(2, 2)

    edge_sum = (q01 + q21) + (q10 + q12)
    corner_sum = (q00 + q02) + (q20 + q22)
    c4 = 4.0 * q11

    filt_ref[0, :, :, :] = edge_sum - c4                              # Laplace-E
    filt_ref[1, :, :, :] = (edge_sum + corner_sum) - (c4 + c4)        # Laplace-D
    filt_ref[2, :, :, :] = (q02 - q00) + 2.0 * (q12 - q10) + (q22 - q20)   # Sobel-V
    filt_ref[3, :, :, :] = (q20 - q00) + 2.0 * (q21 - q01) + (q22 - q02)   # Sobel-H


# --------------------------------- wrapper ----------------------------------

@jax.jit
def lap_sob_gaus_pool(x):
    """Forward pass of Lap_Sob_GausPool for NCHW float input."""
    N, C, H, W = x.shape
    # TODO(synk): support spatial dims not divisible by 4 (PyTorch ceil-sized outputs).
    assert H % 4 == 0 and W % 4 == 0, "H and W must be multiples of 4"
    Ho, Wo = H // 2, W // 2
    Ho2, Wo2 = Ho // 2, Wo // 2
    Hq, Wq = Ho2 + 1, Wo2 + 1
    M = N * C
    Mpad = -(-M // _LANES) * _LANES

    # prologue: lane-dense layout (image axis last), pad, mod-4 x mod-4 phase split.
    # Written as one transpose+pad+reshape chain so XLA fuses it into a single copy.
    xt = jnp.transpose(x.reshape(M, H, W).astype(jnp.float32), (1, 2, 0))   # (H, W, M)
    xp = jnp.pad(xt, ((1, 3), (1, 3), (0, Mpad - M)))                       # (H+4, W+4, Mpad)
    planes = (xp.reshape(Hq, 4, Wq, 4, Mpad)
                .transpose(1, 3, 0, 2, 4)
                .reshape(16, Hq, Wq, Mpad))

    # per-lane f32 bytes of the double-buffered blocks (in + both outs)
    per_lane_bytes = 4 * 2 * (16 * Hq * Wq + 4 * Hq * Wq + 4 * Ho2 * Wo2)
    TM = _pick_tm(Mpad, per_lane_bytes, _VMEM_BUDGET_BYTES)

    kernel = functools.partial(_fused_kernel, Ho2=Ho2, Wo2=Wo2)

    out1q, filt = pl.pallas_call(
        kernel,
        out_shape=(jax.ShapeDtypeStruct((4, Hq, Wq, Mpad), jnp.float32),
                   jax.ShapeDtypeStruct((4, Ho2, Wo2, Mpad), jnp.float32)),
        grid=(Mpad // TM,),
        in_specs=[pl.BlockSpec((16, Hq, Wq, TM), lambda i: (0, 0, 0, i))],
        out_specs=(pl.BlockSpec((4, Hq, Wq, TM), lambda i: (0, 0, 0, i)),
                   pl.BlockSpec((4, Ho2, Wo2, TM), lambda i: (0, 0, 0, i))),
        compiler_params=pltpu.CompilerParams(
            dimension_semantics=("parallel",),        # 2-TC sharding when grid >= 2
            vmem_limit_bytes=_VMEM_LIMIT_BYTES,
        ),
    )(planes)

    # epilogue 1: single re-interleave + NCHW transpose for the Gaussian output.
    # out1[2p+pi, 2t+pj] = q[2*(1-pi)+(1-pj)][p+pi, t+pj]
    p00 = out1q[3, 0:Ho2, 0:Wo2]
    p01 = out1q[2, 0:Ho2, 1:1 + Wo2]
    p10 = out1q[1, 1:1 + Ho2, 0:Wo2]
    p11 = out1q[0, 1:1 + Ho2, 1:1 + Wo2]
    out1 = (jnp.stack([jnp.stack([p00, p01], axis=2),
                       jnp.stack([p10, p11], axis=2)], axis=1)   # (Ho2, 2, Wo2, 2, Mpad)
            .reshape(Ho, Wo, Mpad)
            .transpose(2, 0, 1)[:M]
            .reshape(N, C, Ho, Wo))

    # epilogue 2: ONE transpose for all four filter outputs (instead of four).
    filt_nchw = filt.transpose(0, 3, 1, 2)[:, :M].reshape(4, N, C, Ho2, Wo2)

    return out1, filt_nchw[0], filt_nchw[1], filt_nchw[2], filt_nchw[3]


# ------------------------------ reference (XLA) ------------------------------

def _ref_dwconv(x, w):
    C = x.shape[1]
    wt = jnp.broadcast_to(jnp.asarray(w, jnp.float32)[None, None], (C, 1, 3, 3))
    return jax.lax.conv_general_dilated(
        x.astype(jnp.float32), wt, window_strides=(2, 2),
        padding=((1, 1), (1, 1)),
        dimension_numbers=("NCHW", "OIHW", "NCHW"),
        feature_group_count=C)


def _ref_forward(x):
    out = _ref_dwconv(x, GAUSS_NP)
    return (out, _ref_dwconv(out, LAP_E_NP), _ref_dwconv(out, LAP_D_NP),
            _ref_dwconv(out, SOB_V_NP), _ref_dwconv(out, SOB_H_NP))


# ---------------------------------- main -------------------------------------

if __name__ == "__main__":
    key = jax.random.PRNGKey(0)
    x = jax.random.normal(key, (2, 4, 16, 16), dtype=jnp.float32)

    outs = jax.block_until_ready(lap_sob_gaus_pool(x))

    refs = _ref_forward(x)
    for o, r in zip(outs, refs):
        assert o.shape == r.shape and o.dtype == r.dtype
        np.testing.assert_allclose(np.asarray(o), np.asarray(r), atol=1e-4, rtol=1e-4)

    print("KERNEL_OK")
</pallas_src>

<mosaic_0001>
module attributes {stable_mosaic.version = 11 : i64} {
  func.func @_fused_kernel(%arg0: i32, %arg1: memref<16x5x5x128xf32, #tpu.memory_space<vmem>>, %arg2: memref<4x5x5x128xf32, #tpu.memory_space<vmem>>, %arg3: memref<4x4x4x128xf32, #tpu.memory_space<vmem>>) attributes {dimension_semantics = [#tpu.dimension_semantics<parallel>], iteration_bounds = array<i64: 1>, scalar_prefetch = 0 : i64, scratch_operands = 0 : i64, tpu.core_type = #tpu.core_type<tc>, window_params = [{transform_indices = @transform_0, window_bounds = array<i64: 16, 5, 5, 128>}, {transform_indices = @transform_1, window_bounds = array<i64: 4, 5, 5, 128>}, {transform_indices = @transform_2, window_bounds = array<i64: 4, 4, 4, 128>}]} {
    %cst = arith.constant 0.000000e+00 : f32
    %0 = vector.broadcast %cst : f32 to vector<1x5x128xf32>
    %cst_0 = arith.constant 0.000000e+00 : f32
    %1 = vector.broadcast %cst_0 : f32 to vector<5x1x128xf32>
    %c0 = arith.constant 0 : index
    %c0_1 = arith.constant 0 : index
    %c0_2 = arith.constant 0 : index
    %c0_3 = arith.constant 0 : index
    %2 = vector.load %arg2[%c0, %c0_1, %c0_2, %c0_3] : memref<4x5x5x128xf32, #tpu.memory_space<vmem>>, vector<1x1x5x128xf32>
    %3 = vector.shape_cast %2 : vector<1x1x5x128xf32> to vector<1x5x128xf32>
    %4 = vector.shape_cast %0 : vector<1x5x128xf32> to vector<1x1x5x128xf32>
    tpu.vector_store %arg2[%c0, %c0_1, %c0_2, %c0_3], %4 {strides = array<i32>} : memref<4x5x5x128xf32, #tpu.memory_space<vmem>>, vector<1x1x5x128xf32>,
    %c1 = arith.constant 1 : index
    %c0_4 = arith.constant 0 : index
    %c0_5 = arith.constant 0 : index
    %c0_6 = arith.constant 0 : index
    %5 = vector.load %arg2[%c1, %c0_4, %c0_5, %c0_6] : memref<4x5x5x128xf32, #tpu.memory_space<vmem>>, vector<1x1x5x128xf32>
    %6 = vector.shape_cast %5 : vector<1x1x5x128xf32> to vector<1x5x128xf32>
    %7 = vector.shape_cast %0 : vector<1x5x128xf32> to vector<1x1x5x128xf32>
    tpu.vector_store %arg2[%c1, %c0_4, %c0_5, %c0_6], %7 {strides = array<i32>} : memref<4x5x5x128xf32, #tpu.memory_space<vmem>>, vector<1x1x5x128xf32>,
    %c0_7 = arith.constant 0 : index
    %c0_8 = arith.constant 0 : index
    %c0_9 = arith.constant 0 : index
    %c0_10 = arith.constant 0 : index
    %8 = vector.load %arg2[%c0_7, %c0_8, %c0_9, %c0_10] : memref<4x5x5x128xf32, #tpu.memory_space<vmem>>, vector<1x5x1x128xf32>
    %9 = vector.shape_cast %8 : vector<1x5x1x128xf32> to vector<5x1x128xf32>
    %10 = vector.shape_cast %1 : vector<5x1x128xf32> to vector<1x5x1x128xf32>
    tpu.vector_store %arg2[%c0_7, %c0_8, %c0_9, %c0_10], %10 {strides = array<i32>} : memref<4x5x5x128xf32, #tpu.memory_space<vmem>>, vector<1x5x1x128xf32>,
    %c2 = arith.constant 2 : index
    %c0_11 = arith.constant 0 : index
    %c0_12 = arith.constant 0 : index
    %c0_13 = arith.constant 0 : index
    %11 = vector.load %arg2[%c2, %c0_11, %c0_12, %c0_13] : memref<4x5x5x128xf32, #tpu.memory_space<vmem>>, vector<1x5x1x128xf32>
    %12 = vector.shape_cast %11 : vector<1x5x1x128xf32> to vector<5x1x128xf32>
    %13 = vector.shape_cast %1 : vector<5x1x128xf32> to vector<1x5x1x128xf32>
    tpu.vector_store %arg2[%c2, %c0_11, %c0_12, %c0_13], %13 {strides = array<i32>} : memref<4x5x5x128xf32, #tpu.memory_space<vmem>>, vector<1x5x1x128xf32>,
    %c0_14 = arith.constant 0 : index
    %c0_15 = arith.constant 0 : index
    %c0_16 = arith.constant 0 : index
    %c0_17 = arith.constant 0 : index
    %14 = vector.load %arg1[%c0_14, %c0_15, %c0_16, %c0_17] : memref<16x5x5x128xf32, #tpu.memory_space<vmem>>, vector<1x4x4x128xf32>
    %15 = vector.shape_cast %14 : vector<1x4x4x128xf32> to vector<4x4x128xf32>
    %c2_18 = arith.constant 2 : index
    %c0_19 = arith.constant 0 : index
    %c0_20 = arith.constant 0 : index
    %c0_21 = arith.constant 0 : index
    %16 = vector.load %arg1[%c2_18, %c0_19, %c0_20, %c0_21] : memref<16x5x5x128xf32, #tpu.memory_space<vmem>>, vector<1x4x4x128xf32>
    %17 = vector.shape_cast %16 : vector<1x4x4x128xf32> to vector<4x4x128xf32>
    %18 = arith.addf %15, %17 : vector<4x4x128xf32>
    %c8 = arith.constant 8 : index
    %c0_22 = arith.constant 0 : index
    %c0_23 = arith.constant 0 : index
    %c0_24 = arith.constant 0 : index
    %19 = vector.load %arg1[%c8, %c0_22, %c0_23, %c0_24] : memref<16x5x5x128xf32, #tpu.memory_space<vmem>>, vector<1x4x4x128xf32>
    %20 = vector.shape_cast %19 : vector<1x4x4x128xf32> to vector<4x4x128xf32>
    %c10 = arith.constant 10 : index
    %c0_25 = arith.constant 0 : index
    %c0_26 = arith.constant 0 : index
    %c0_27 = arith.constant 0 : index
    %21 = vector.load %arg1[%c10, %c0_25, %c0_26, %c0_27] : memref<16x5x5x128xf32, #tpu.memory_space<vmem>>, vector<1x4x4x128xf32>
    %22 = vector.shape_cast %21 : vector<1x4x4x128xf32> to vector<4x4x128xf32>
    %23 = arith.addf %20, %22 : vector<4x4x128xf32>
    %24 = arith.addf %18, %23 : vector<4x4x128xf32>
    %c1_28 = arith.constant 1 : index
    %c0_29 = arith.constant 0 : index
    %c0_30 = arith.constant 0 : index
    %c0_31 = arith.constant 0 : index
    %25 = vector.load %arg1[%c1_28, %c0_29, %c0_30, %c0_31] : memref<16x5x5x128xf32, #tpu.memory_space<vmem>>, vector<1x4x4x128xf32>
    %26 = vector.shape_cast %25 : vector<1x4x4x128xf32> to vector<4x4x128xf32>
    %c9 = arith.constant 9 : index
    %c0_32 = arith.constant 0 : index
    %c0_33 = arith.constant 0 : index
    %c0_34 = arith.constant 0 : index
    %27 = vector.load %arg1[%c9, %c0_32, %c0_33, %c0_34] : memref<16x5x5x128xf32, #tpu.memory_space<vmem>>, vector<1x4x4x128xf32>
    %28 = vector.shape_cast %27 : vector<1x4x4x128xf32> to vector<4x4x128xf32>
    %29 = arith.addf %26, %28 : vector<4x4x128xf32>
    %c4 = arith.constant 4 : index
    %c0_35 = arith.constant 0 : index
    %c0_36 = arith.constant 0 : index
    %c0_37 = arith.constant 0 : index
    %30 = vector.load %arg1[%c4, %c0_35, %c0_36, %c0_37] : memref<16x5x5x128xf32, #tpu.memory_space<vmem>>, vector<1x4x4x128xf32>
    %31 = vector.shape_cast %30 : vector<1x4x4x128xf32> to vector<4x4x128xf32>
    %c6 = arith.constant 6 : index
    %c0_38 = arith.constant 0 : index
    %c0_39 = arith.constant 0 : index
    %c0_40 = arith.constant 0 : index
    %32 = vector.load %arg1[%c6, %c0_38, %c0_39, %c0_40] : memref<16x5x5x128xf32, #tpu.memory_space<vmem>>, vector<1x4x4x128xf32>
    %33 = vector.shape_cast %32 : vector<1x4x4x128xf32> to vector<4x4x128xf32>
    %34 = arith.addf %31, %33 : vector<4x4x128xf32>
    %35 = arith.addf %29, %34 : vector<4x4x128xf32>
    %c5 = arith.constant 5 : index
    %c0_41 = arith.constant 0 : index
    %c0_42 = arith.constant 0 : index
    %c0_43 = arith.constant 0 : index
    %36 = vector.load %arg1[%c5, %c0_41, %c0_42, %c0_43] : memref<16x5x5x128xf32, #tpu.memory_space<vmem>>, vector<1x4x4x128xf32>
    %37 = vector.shape_cast %36 : vector<1x4x4x128xf32> to vector<4x4x128xf32>
    %cst_44 = arith.constant 0.0751136094 : f32
    %38 = vector.broadcast %cst_44 : f32 to vector<4x4x128xf32>
    %39 = arith.mulf %38, %24 : vector<4x4x128xf32>
    %cst_45 = arith.constant 0.123841405 : f32
    %40 = vector.broadcast %cst_45 : f32 to vector<4x4x128xf32>
    %41 = arith.mulf %40, %35 : vector<4x4x128xf32>
    %42 = arith.addf %39, %41 : vector<4x4x128xf32>
    %cst_46 = arith.constant 0.204179958 : f32
    %43 = vector.broadcast %cst_46 : f32 to vector<4x4x128xf32>
    %44 = arith.mulf %43, %37 : vector<4x4x128xf32>
    %45 = arith.addf %42, %44 : vector<4x4x128xf32>
    %c3 = arith.constant 3 : index
    %c0_47 = arith.constant 0 : index
    %c0_48 = arith.constant 0 : index
    %c0_49 = arith.constant 0 : index
    %46 = vector.load %arg2[%c3, %c0_47, %c0_48, %c0_49] : memref<4x5x5x128xf32, #tpu.memory_space<vmem>>, vector<1x4x4x128xf32>
    %47 = vector.shape_cast %46 : vector<1x4x4x128xf32> to vector<4x4x128xf32>
    %48 = vector.shape_cast %45 : vector<4x4x128xf32> to vector<1x4x4x128xf32>
    tpu.vector_store %arg2[%c3, %c0_47, %c0_48, %c0_49], %48 {strides = array<i32>} : memref<4x5x5x128xf32, #tpu.memory_space<vmem>>, vector<1x4x4x128xf32>,
    %c0_50 = arith.constant 0 : index
    %c0_51 = arith.constant 0 : index
    %c1_52 = arith.constant 1 : index
    %c0_53 = arith.constant 0 : index
    %49 = vector.load %arg1[%c0_50, %c0_51, %c1_52, %c0_53] : memref<16x5x5x128xf32, #tpu.memory_space<vmem>>, vector<1x4x4x128xf32>
    %50 = vector.shape_cast %49 : vector<1x4x4x128xf32> to vector<4x4x128xf32>
    %51 = arith.addf %17, %50 : vector<4x4x128xf32>
    %c8_54 = arith.constant 8 : index
    %c0_55 = arith.constant 0 : index
    %c1_56 = arith.constant 1 : index
    %c0_57 = arith.constant 0 : index
    %52 = vector.load %arg1[%c8_54, %c0_55, %c1_56, %c0_57] : memref<16x5x5x128xf32, #tpu.memory_space<vmem>>, vector<1x4x4x128xf32>
    %53 = vector.shape_cast %52 : vector<1x4x4x128xf32> to vector<4x4x128xf32>
    %54 = arith.addf %22, %53 : vector<4x4x128xf32>
    %55 = arith.addf %51, %54 : vector<4x4x128xf32>
    %c3_58 = arith.constant 3 : index
    %c0_59 = arith.constant 0 : index
    %c0_60 = arith.constant 0 : index
    %c0_61 = arith.constant 0 : index
    %56 = vector.load %arg1[%c3_58, %c0_59, %c0_60, %c0_61] : memref<16x5x5x128xf32, #tpu.memory_space<vmem>>, vector<1x4x4x128xf32>
    %57 = vector.shape_cast %56 : vector<1x4x4x128xf32> to vector<4x4x128xf32>
    %c11 = arith.constant 11 : index
    %c0_62 = arith.constant 0 : index
    %c0_63 = arith.constant 0 : index
    %c0_64 = arith.constant 0 : index
    %58 = vector.load %arg1[%c11, %c0_62, %c0_63, %c0_64] : memref<16x5x5x128xf32, #tpu.memory_space<vmem>>, vector<1x4x4x128xf32>
    %59 = vector.shape_cast %58 : vector<1x4x4x128xf32> to vector<4x4x128xf32>
    %60 = arith.addf %57, %59 : vector<4x4x128xf32>
    %c4_65 = arith.constant 4 : index
    %c0_66 = arith.constant 0 : index
    %c1_67 = arith.constant 1 : index
    %c0_68 = arith.constant 0 : index
    %61 = vector.load %arg1[%c4_65, %c0_66, %c1_67, %c0_68] : memref<16x5x5x128xf32, #tpu.memory_space<vmem>>, vector<1x4x4x128xf32>
    %62 = vector.shape_cast %61 : vector<1x4x4x128xf32> to vector<4x4x128xf32>
    %63 = arith.addf %33, %62 : vector<4x4x128xf32>
    %64 = arith.addf %60, %63 : vector<4x4x128xf32>
    %c7 = arith.constant 7 : index
    %c0_69 = arith.constant 0 : index
    %c0_70 = arith.constant 0 : index
    %c0_71 = arith.constant 0 : index
    %65 = vector.load %arg1[%c7, %c0_69, %c0_70, %c0_71] : memref<16x5x5x128xf32, #tpu.memory_space<vmem>>, vector<1x4x4x128xf32>
    %66 = vector.shape_cast %65 : vector<1x4x4x128xf32> to vector<4x4x128xf32>
    %cst_72 = arith.constant 0.0751136094 : f32
    %67 = vector.broadcast %cst_72 : f32 to vector<4x4x128xf32>
    %68 = arith.mulf %67, %55 : vector<4x4x128xf32>
    %cst_73 = arith.constant 0.123841405 : f32
    %69 = vector.broadcast %cst_73 : f32 to vector<4x4x128xf32>
    %70 = arith.mulf %69, %64 : vector<4x4x128xf32>
    %71 = arith.addf %68, %70 : vector<4x4x128xf32>
    %cst_74 = arith.constant 0.204179958 : f32
    %72 = vector.broadcast %cst_74 : f32 to vector<4x4x128xf32>
    %73 = arith.mulf %72, %66 : vector<4x4x128xf32>
    %74 = arith.addf %71, %73 : vector<4x4x128xf32>
    %c2_75 = arith.constant 2 : index
    %c0_76 = arith.constant 0 : index
    %c1_77 = arith.constant 1 : index
    %c0_78 = arith.constant 0 : index
    %75 = vector.load %arg2[%c2_75, %c0_76, %c1_77, %c0_78] : memref<4x5x5x128xf32, #tpu.memory_space<vmem>>, vector<1x4x4x128xf32>
    %76 = vector.shape_cast %75 : vector<1x4x4x128xf32> to vector<4x4x128xf32>
    %77 = vector.shape_cast %74 : vector<4x4x128xf32> to vector<1x4x4x128xf32>
    tpu.vector_store %arg2[%c2_75, %c0_76, %c1_77, %c0_78], %77 {strides = array<i32>} : memref<4x5x5x128xf32, #tpu.memory_space<vmem>>, vector<1x4x4x128xf32>,
    %78 = arith.addf %20, %22 : vector<4x4x128xf32>
    %c0_79 = arith.constant 0 : index
    %c1_80 = arith.constant 1 : index
    %c0_81 = arith.constant 0 : index
    %c0_82 = arith.constant 0 : index
    %79 = vector.load %arg1[%c0_79, %c1_80, %c0_81, %c0_82] : memref<16x5x5x128xf32, #tpu.memory_space<vmem>>, vector<1x4x4x128xf32>
    %80 = vector.shape_cast %79 : vector<1x4x4x128xf32> to vector<4x4x128xf32>
    %c2_83 = arith.constant 2 : index
    %c1_84 = arith.constant 1 : index
    %c0_85 = arith.constant 0 : index
    %c0_86 = arith.constant 0 : index
    %81 = vector.load %arg1[%c2_83, %c1_84, %c0_85, %c0_86] : memref<16x5x5x128xf32, #tpu.memory_space<vmem>>, vector<1x4x4x128xf32>
    %82 = vector.shape_cast %81 : vector<1x4x4x128xf32> to vector<4x4x128xf32>
    %83 = arith.addf %80, %82 : vector<4x4x128xf32>
    %84 = arith.addf %78, %83 : vector<4x4x128xf32>
    %c1_87 = arith.constant 1 : index
    %c1_88 = arith.constant 1 : index
    %c0_89 = arith.constant 0 : index
    %c0_90 = arith.constant 0 : index
    %85 = vector.load %arg1[%c1_87, %c1_88, %c0_89, %c0_90] : memref<16x5x5x128xf32, #tpu.memory_space<vmem>>, vector<1x4x4x128xf32>
    %86 = vector.shape_cast %85 : vector<1x4x4x128xf32> to vector<4x4x128xf32>
    %87 = arith.addf %28, %86 : vector<4x4x128xf32>
    %c12 = arith.constant 12 : index
    %c0_91 = arith.constant 0 : index
    %c0_92 = arith.constant 0 : index
    %c0_93 = arith.constant 0 : index
    %88 = vector.load %arg1[%c12, %c0_91, %c0_92, %c0_93] : memref<16x5x5x128xf32, #tpu.memory_space<vmem>>, vector<1x4x4x128xf32>
    %89 = vector.shape_cast %88 : vector<1x4x4x128xf32> to vector<4x4x128xf32>
    %c14 = arith.constant 14 : index
    %c0_94 = arith.constant 0 : index
    %c0_95 = arith.constant 0 : index
    %c0_96 = arith.constant 0 : index
    %90 = vector.load %arg1[%c14, %c0_94, %c0_95, %c0_96] : memref<16x5x5x128xf32, #tpu.memory_space<vmem>>, vector<1x4x4x128xf32>
    %91 = vector.shape_cast %90 : vector<1x4x4x128xf32> to vector<4x4x128xf32>
    %92 = arith.addf %89, %91 : vector<4x4x128xf32>
    %93 = arith.addf %87, %92 : vector<4x4x128xf32>
    %c13 = arith.constant 13 : index
    %c0_97 = arith.constant 0 : index
    %c0_98 = arith.constant 0 : index
    %c0_99 = arith.constant 0 : index
    %94 = vector.load %arg1[%c13, %c0_97, %c0_98, %c0_99] : memref<16x5x5x128xf32, #tpu.memory_space<vmem>>, vector<1x4x4x128xf32>
    %95 = vector.shape_cast %94 : vector<1x4x4x128xf32> to vector<4x4x128xf32>
    %cst_100 = arith.constant 0.0751136094 : f32
    %96 = vector.broadcast %cst_100 : f32 to vector<4x4x128xf32>
    %97 = arith.mulf %96, %84 : vector<4x4x128xf32>
    %cst_101 = arith.constant 0.123841405 : f32
    %98 = vector.broadcast %cst_101 : f32 to vector<4x4x128xf32>
    %99 = arith.mulf %98, %93 : vector<4x4x128xf32>
    %100 = arith.addf %97, %99 : vector<4x4x128xf32>
    %cst_102 = arith.constant 0.204179958 : f32
    %101 = vector.broadcast %cst_102 : f32 to vector<4x4x128xf32>
    %102 = arith.mulf %101, %95 : vector<4x4x128xf32>
    %103 = arith.addf %100, %102 : vector<4x4x128xf32>
    %c1_103 = arith.constant 1 : index
    %c1_104 = arith.constant 1 : index
    %c0_105 = arith.constant 0 : index
    %c0_106 = arith.constant 0 : index
    %104 = vector.load %arg2[%c1_103, %c1_104, %c0_105, %c0_106] : memref<4x5x5x128xf32, #tpu.memory_space<vmem>>, vector<1x4x4x128xf32>
    %105 = vector.shape_cast %104 : vector<1x4x4x128xf32> to vector<4x4x128xf32>
    %106 = vector.shape_cast %103 : vector<4x4x128xf32> to vector<1x4x4x128xf32>
    tpu.vector_store %arg2[%c1_103, %c1_104, %c0_105, %c0_106], %106 {strides = array<i32>} : memref<4x5x5x128xf32, #tpu.memory_space<vmem>>, vector<1x4x4x128xf32>,
    %107 = arith.addf %22, %53 : vector<4x4x128xf32>
    %c0_107 = arith.constant 0 : index
    %c1_108 = arith.constant 1 : index
    %c1_109 = arith.constant 1 : index
    %c0_110 = arith.constant 0 : index
    %108 = vector.load %arg1[%c0_107, %c1_108, %c1_109, %c0_110] : memref<16x5x5x128xf32, #tpu.memory_space<vmem>>, vector<1x4x4x128xf32>
    %109 = vector.shape_cast %108 : vector<1x4x4x128xf32> to vector<4x4x128xf32>
    %110 = arith.addf %82, %109 : vector<4x4x128xf32>
    %111 = arith.addf %107, %110 : vector<4x4x128xf32>
    %c3_111 = arith.constant 3 : index
    %c1_112 = arith.constant 1 : index
    %c0_113 = arith.constant 0 : index
    %c0_114 = arith.constant 0 : index
    %112 = vector.load %arg1[%c3_111, %c1_112, %c0_113, %c0_114] : memref<16x5x5x128xf32, #tpu.memory_space<vmem>>, vector<1x4x4x128xf32>
    %113 = vector.shape_cast %112 : vector<1x4x4x128xf32> to vector<4x4x128xf32>
    %114 = arith.addf %59, %113 : vector<4x4x128xf32>
    %c12_115 = arith.constant 12 : index
    %c0_116 = arith.constant 0 : index
    %c1_117 = arith.constant 1 : index
    %c0_118 = arith.constant 0 : index
    %115 = vector.load %arg1[%c12_115, %c0_116, %c1_117, %c0_118] : memref<16x5x5x128xf32, #tpu.memory_space<vmem>>, vector<1x4x4x128xf32>
    %116 = vector.shape_cast %115 : vector<1x4x4x128xf32> to vector<4x4x128xf32>
    %117 = arith.addf %91, %116 : vector<4x4x128xf32>
    %118 = arith.addf %114, %117 : vector<4x4x128xf32>
    %c15 = arith.constant 15 : index
    %c0_119 = arith.constant 0 : index
    %c0_120 = arith.constant 0 : index
    %c0_121 = arith.constant 0 : index
    %119 = vector.load %arg1[%c15, %c0_119, %c0_120, %c0_121] : memref<16x5x5x128xf32, #tpu.memory_space<vmem>>, vector<1x4x4x128xf32>
    %120 = vector.shape_cast %119 : vector<1x4x4x128xf32> to vector<4x4x128xf32>
    %cst_122 = arith.constant 0.0751136094 : f32
    %121 = vector.broadcast %cst_122 : f32 to vector<4x4x128xf32>
    %122 = arith.mulf %121, %111 : vector<4x4x128xf32>
    %cst_123 = arith.constant 0.123841405 : f32
    %123 = vector.broadcast %cst_123 : f32 to vector<4x4x128xf32>
    %124 = arith.mulf %123, %118 : vector<4x4x128xf32>
    %125 = arith.addf %122, %124 : vector<4x4x128xf32>
    %cst_124 = arith.constant 0.204179958 : f32
    %126 = vector.broadcast %cst_124 : f32 to vector<4x4x128xf32>
    %127 = arith.mulf %126, %120 : vector<4x4x128xf32>
    %128 = arith.addf %125, %127 : vector<4x4x128xf32>
    %c0_125 = arith.constant 0 : index
    %c1_126 = arith.constant 1 : index
    %c1_127 = arith.constant 1 : index
    %c0_128 = arith.constant 0 : index
    %129 = vector.load %arg2[%c0_125, %c1_126, %c1_127, %c0_128] : memref<4x5x5x128xf32, #tpu.memory_space<vmem>>, vector<1x4x4x128xf32>
    %130 = vector.shape_cast %129 : vector<1x4x4x128xf32> to vector<4x4x128xf32>
    %131 = vector.shape_cast %128 : vector<4x4x128xf32> to vector<1x4x4x128xf32>
    tpu.vector_store %arg2[%c0_125, %c1_126, %c1_127, %c0_128], %131 {strides = array<i32>} : memref<4x5x5x128xf32, #tpu.memory_space<vmem>>, vector<1x4x4x128xf32>,
    %c0_129 = arith.constant 0 : index
    %c0_130 = arith.constant 0 : index
    %c0_131 = arith.constant 0 : index
    %c0_132 = arith.constant 0 : index
    %132 = vector.load %arg2[%c0_129, %c0_130, %c0_131, %c0_132] : memref<4x5x5x128xf32, #tpu.memory_space<vmem>>, vector<1x4x4x128xf32>
    %133 = vector.shape_cast %132 : vector<1x4x4x128xf32> to vector<4x4x128xf32>
    %c1_133 = arith.constant 1 : index
    %c0_134 = arith.constant 0 : index
    %c0_135 = arith.constant 0 : index
    %c0_136 = arith.constant 0 : index
    %134 = vector.load %arg2[%c1_133, %c0_134, %c0_135, %c0_136] : memref<4x5x5x128xf32, #tpu.memory_space<vmem>>, vector<1x4x4x128xf32>
    %135 = vector.shape_cast %134 : vector<1x4x4x128xf32> to vector<4x4x128xf32>
    %c0_137 = arith.constant 0 : index
    %c0_138 = arith.constant 0 : index
    %c1_139 = arith.constant 1 : index
    %c0_140 = arith.constant 0 : index
    %136 = vector.load %arg2[%c0_137, %c0_138, %c1_139, %c0_140] : memref<4x5x5x128xf32, #tpu.memory_space<vmem>>, vector<1x4x4x128xf32>
    %137 = vector.shape_cast %136 : vector<1x4x4x128xf32> to vector<4x4x128xf32>
    %c2_141 = arith.constant 2 : index
    %c0_142 = arith.constant 0 : index
    %c0_143 = arith.constant 0 : index
    %c0_144 = arith.constant 0 : index
    %138 = vector.load %arg2[%c2_141, %c0_142, %c0_143, %c0_144] : memref<4x5x5x128xf32, #tpu.memory_space<vmem>>, vector<1x4x4x128xf32>
    %139 = vector.shape_cast %138 : vector<1x4x4x128xf32> to vector<4x4x128xf32>
    %c3_145 = arith.constant 3 : index
    %c0_146 = arith.constant 0 : index
    %c0_147 = arith.constant 0 : index
    %c0_148 = arith.constant 0 : index
    %140 = vector.load %arg2[%c3_145, %c0_146, %c0_147, %c0_148] : memref<4x5x5x128xf32, #tpu.memory_space<vmem>>, vector<1x4x4x128xf32>
    %141 = vector.shape_cast %140 : vector<1x4x4x128xf32> to vector<4x4x128xf32>
    %c2_149 = arith.constant 2 : index
    %c0_150 = arith.constant 0 : index
    %c1_151 = arith.constant 1 : index
    %c0_152 = arith.constant 0 : index
    %142 = vector.load %arg2[%c2_149, %c0_150, %c1_151, %c0_152] : memref<4x5x5x128xf32, #tpu.memory_space<vmem>>, vector<1x4x4x128xf32>
    %143 = vector.shape_cast %142 : vector<1x4x4x128xf32> to vector<4x4x128xf32>
    %c0_153 = arith.constant 0 : index
    %c1_154 = arith.constant 1 : index
    %c0_155 = arith.constant 0 : index
    %c0_156 = arith.constant 0 : index
    %144 = vector.load %arg2[%c0_153, %c1_154, %c0_155, %c0_156] : memref<4x5x5x128xf32, #tpu.memory_space<vmem>>, vector<1x4x4x128xf32>
    %145 = vector.shape_cast %144 : vector<1x4x4x128xf32> to vector<4x4x128xf32>
    %c1_157 = arith.constant 1 : index
    %c1_158 = arith.constant 1 : index
    %c0_159 = arith.constant 0 : index
    %c0_160 = arith.constant 0 : index
    %146 = vector.load %arg2[%c1_157, %c1_158, %c0_159, %c0_160] : memref<4x5x5x128xf32, #tpu.memory_space<vmem>>, vector<1x4x4x128xf32>
    %147 = vector.shape_cast %146 : vector<1x4x4x128xf32> to vector<4x4x128xf32>
    %c0_161 = arith.constant 0 : index
    %c1_162 = arith.constant 1 : index
    %c1_163 = arith.constant 1 : index
    %c0_164 = arith.constant 0 : index
    %148 = vector.load %arg2[%c0_161, %c1_162, %c1_163, %c0_164] : memref<4x5x5x128xf32, #tpu.memory_space<vmem>>, vector<1x4x4x128xf32>
    %149 = vector.shape_cast %148 : vector<1x4x4x128xf32> to vector<4x4x128xf32>
    %150 = arith.addf %135, %147 : vector<4x4x128xf32>
    %151 = arith.addf %139, %143 : vector<4x4x128xf32>
    %152 = arith.addf %150, %151 : vector<4x4x128xf32>
    %153 = arith.addf %133, %137 : vector<4x4x128xf32>
    %154 = arith.addf %145, %149 : vector<4x4x128xf32>
    %155 = arith.addf %153, %154 : vector<4x4x128xf32>
    %cst_165 = arith.constant 4.000000e+00 : f32
    %156 = vector.broadcast %cst_165 : f32 to vector<4x4x128xf32>
    %157 = arith.mulf %156, %141 : vector<4x4x128xf32>
    %158 = arith.subf %152, %157 : vector<4x4x128xf32>
    %c0_166 = arith.constant 0 : index
    %c0_167 = arith.constant 0 : index
    %c0_168 = arith.constant 0 : index
    %c0_169 = arith.constant 0 : index
    %159 = vector.load %arg3[%c0_166, %c0_167, %c0_168, %c0_169] : memref<4x4x4x128xf32, #tpu.memory_space<vmem>>, vector<1x4x4x128xf32>
    %160 = vector.shape_cast %159 : vector<1x4x4x128xf32> to vector<4x4x128xf32>
    %161 = vector.shape_cast %158 : vector<4x4x128xf32> to vector<1x4x4x128xf32>
    tpu.vector_store %arg3[%c0_166, %c0_167, %c0_168, %c0_169], %161 {strides = array<i32>} : memref<4x4x4x128xf32, #tpu.memory_space<vmem>>, vector<1x4x4x128xf32>,
    %162 = arith.addf %152, %155 : vector<4x4x128xf32>
    %163 = arith.addf %157, %157 : vector<4x4x128xf32>
    %164 = arith.subf %162, %163 : vector<4x4x128xf32>
    %c1_170 = arith.constant 1 : index
    %c0_171 = arith.constant 0 : index
    %c0_172 = arith.constant 0 : index
    %c0_173 = arith.constant 0 : index
    %165 = vector.load %arg3[%c1_170, %c0_171, %c0_172, %c0_173] : memref<4x4x4x128xf32, #tpu.memory_space<vmem>>, vector<1x4x4x128xf32>
    %166 = vector.shape_cast %165 : vector<1x4x4x128xf32> to vector<4x4x128xf32>
    %167 = vector.shape_cast %164 : vector<4x4x128xf32> to vector<1x4x4x128xf32>
    tpu.vector_store %arg3[%c1_170, %c0_171, %c0_172, %c0_173], %167 {strides = array<i32>} : memref<4x4x4x128xf32, #tpu.memory_space<vmem>>, vector<1x4x4x128xf32>,
    %168 = arith.subf %137, %133 : vector<4x4x128xf32>
    %169 = arith.subf %143, %139 : vector<4x4x128xf32>
    %cst_174 = arith.constant 2.000000e+00 : f32
    %170 = vector.broadcast %cst_174 : f32 to vector<4x4x128xf32>
    %171 = arith.mulf %170, %169 : vector<4x4x128xf32>
    %172 = arith.addf %168, %171 : vector<4x4x128xf32>
    %173 = arith.subf %149, %145 : vector<4x4x128xf32>
    %174 = arith.addf %172, %173 : vector<4x4x128xf32>
    %c2_175 = arith.constant 2 : index
    %c0_176 = arith.constant 0 : index
    %c0_177 = arith.constant 0 : index
    %c0_178 = arith.constant 0 : index
    %175 = vector.load %arg3[%c2_175, %c0_176, %c0_177, %c0_178] : memref<4x4x4x128xf32, #tpu.memory_space<vmem>>, vector<1x4x4x128xf32>
    %176 = vector.shape_cast %175 : vector<1x4x4x128xf32> to vector<4x4x128xf32>
    %177 = vector.shape_cast %174 : vector<4x4x128xf32> to vector<1x4x4x128xf32>
    tpu.vector_store %arg3[%c2_175, %c0_176, %c0_177, %c0_178], %177 {strides = array<i32>} : memref<4x4x4x128xf32, #tpu.memory_space<vmem>>, vector<1x4x4x128xf32>,
    %178 = arith.subf %145, %133 : vector<4x4x128xf32>
    %179 = arith.subf %147, %135 : vector<4x4x128xf32>
    %cst_179 = arith.constant 2.000000e+00 : f32
    %180 = vector.broadcast %cst_179 : f32 to vector<4x4x128xf32>
    %181 = arith.mulf %180, %179 : vector<4x4x128xf32>
    %182 = arith.addf %178, %181 : vector<4x4x128xf32>
    %183 = arith.subf %149, %137 : vector<4x4x128xf32>
    %184 = arith.addf %182, %183 : vector<4x4x128xf32>
    %c3_180 = arith.constant 3 : index
    %c0_181 = arith.constant 0 : index
    %c0_182 = arith.constant 0 : index
    %c0_183 = arith.constant 0 : index
    %185 = vector.load %arg3[%c3_180, %c0_181, %c0_182, %c0_183] : memref<4x4x4x128xf32, #tpu.memory_space<vmem>>, vector<1x4x4x128xf32>
    %186 = vector.shape_cast %185 : vector<1x4x4x128xf32> to vector<4x4x128xf32>
    %187 = vector.shape_cast %184 : vector<4x4x128xf32> to vector<1x4x4x128xf32>
    tpu.vector_store %arg3[%c3_180, %c0_181, %c0_182, %c0_183], %187 {strides = array<i32>} : memref<4x4x4x128xf32, #tpu.memory_space<vmem>>, vector<1x4x4x128xf32>,
    return
  }
  func.func @transform_0(%arg0: i32) -> (i32, i32, i32, i32) {
    %c0_i32 = arith.constant 0 : i32
    %c0_i32_0 = arith.constant 0 : i32
    %c0_i32_1 = arith.constant 0 : i32
    %c0_i32_2 = arith.constant 0 : i32
    return %c0_i32, %c0_i32_0, %c0_i32_1, %arg0 : i32, i32, i32, i32
  }
  func.func @transform_1(%arg0: i32) -> (i32, i32, i32, i32) {
    %c0_i32 = arith.constant 0 : i32
    %c0_i32_0 = arith.constant 0 : i32
    %c0_i32_1 = arith.constant 0 : i32
    %c0_i32_2 = arith.constant 0 : i32
    return %c0_i32, %c0_i32_0, %c0_i32_1, %arg0 : i32, i32, i32, i32
  }
  func.func @transform_2(%arg0: i32) -> (i32, i32, i32, i32) {
    %c0_i32 = arith.constant 0 : i32
    %c0_i32_0 = arith.constant 0 : i32
    %c0_i32_1 = arith.constant 0 : i32
    %c0_i32_2 = arith.constant 0 : i32
    return %c0_i32, %c0_i32_0, %c0_i32_1, %arg0 : i32, i32, i32, i32
  }
}

</mosaic_0001>

<llo_original>
// kernel: lap_sob_gaus_pool.1
$region0: #{lap_sob_gaus_pool.1}
  #allocation0 [shape = 'u32[]', space=smem, size = 0x4, offset = 0x4, fixed_abs, tag = 'smem constant byte address 0x4 - core index']
  #allocation1 [shape = 'u32[144,128]{1,0:T(1,128)}', space=vmem, size = 0x12000, scoped, tag = 'internal scratch']
  %s0 = inlined_call_operand.vmem [shape: f32[16,5,5,128], index: 0, kind: input, shape index: {}]
  %s1 = inlined_call_operand.vmem [shape: f32[4,5,5,128], index: 1, kind: output, shape index: {0}]
  %s2 = inlined_call_operand.vmem [shape: f32[4,4,4,128], index: 2, kind: output, shape index: {1}]
  %3 = xla_tuple %s1, %s2
  %s4 = sld [smem:[#allocation0]]
  $region22: #{lap_sob_gaus_pool.1} parent=0
    _
  %s6 = ssub.s32 1, %s4
  %s7 = scalar_select 0, %s6, %s4
  // Predicated region
  $region2: #{lap_sob_gaus_pool.1} parent=0 // pred_check
    _
  $region3: #{lap_sob_gaus_pool.1} parent=0 // pred_check_branch
    %9 = sbr.rel (0) target = $region5
  $region4: #{lap_sob_gaus_pool.1} parent=0 // pred_region
    _
  $region5: #{lap_sob_gaus_pool.1} parent=0 // pred_fallthru
    _
  %10 = vst [vmem:[%s1] sm:$0x1f] 0.0
  %s11 = scalar_lea.vmem %s1, 40
  %12 = vst [vmem:[%s11] sm:$0x1f] 0.0
  %13 = vst [vmem:[%s1] sm:$0x1] 0.0
  %14 = vst [vmem:[%s1 + $0x8] sm:$0x1] 0.0
  %15 = vst [vmem:[%s1 + $0x10] sm:$0x1] 0.0
  %16 = vst [vmem:[%s1 + $0x18] sm:$0x1] 0.0
  %17 = vst [vmem:[%s1 + $0x20] sm:$0x1] 0.0
  %s18 = scalar_lea.vmem %s1, 80
  %19 = vst [vmem:[%s18] sm:$0x1] 0.0
  %20 = vst [vmem:[%s18 + $0x8] sm:$0x1] 0.0
  %21 = vst [vmem:[%s18 + $0x10] sm:$0x1] 0.0
  %22 = vst [vmem:[%s18 + $0x18] sm:$0x1] 0.0
  %23 = vst [vmem:[%s18 + $0x20] sm:$0x1] 0.0
  %v24 = vld [vmem:[%s0] sm:$0xf]
  %v25 = vld [vmem:[%s0 + $0x8] sm:$0xf]
  %v26 = vld [vmem:[%s0 + $0x10] sm:$0xf]
  %v27 = vld [vmem:[%s0 + $0x18] sm:$0xf]
  %s28 = scalar_lea.vmem %s0, 80
  %v29 = vld [vmem:[%s28] sm:$0xf]
  %v30 = vld [vmem:[%s28 + $0x8] sm:$0xf]
  %v31 = vld [vmem:[%s28 + $0x10] sm:$0xf]
  %v32 = vld [vmem:[%s28 + $0x18] sm:$0xf]
  %v33 = vadd.f32 %v24, %v29
  %v34 = vadd.f32 %v25, %v30
  %v35 = vadd.f32 %v26, %v31
  %v36 = vadd.f32 %v27, %v32
  %s37 = scalar_lea.vmem %s0, 320
  %v38 = vld [vmem:[%s37] sm:$0xf]
  %v39 = vld [vmem:[%s37 + $0x8] sm:$0xf]
  %v40 = vld [vmem:[%s37 + $0x10] sm:$0xf]
  %v41 = vld [vmem:[%s37 + $0x18] sm:$0xf]
  %s42 = scalar_lea.vmem %s0, 400
  %v43 = vld [vmem:[%s42] sm:$0xf]
  %v44 = vld [vmem:[%s42 + $0x8] sm:$0xf]
  %v45 = vld [vmem:[%s42 + $0x10] sm:$0xf]
  %v46 = vld [vmem:[%s42 + $0x18] sm:$0xf]
  %v47 = vadd.f32 %v38, %v43
  %v48 = vadd.f32 %v39, %v44
  %v49 = vadd.f32 %v40, %v45
  %v50 = vadd.f32 %v41, %v46
  %v51 = vadd.f32 %v33, %v47
  %v52 = vadd.f32 %v34, %v48
  %v53 = vadd.f32 %v35, %v49
  %v54 = vadd.f32 %v36, %v50
  %s55 = scalar_lea.vmem %s0, 40
  %v56 = vld [vmem:[%s55] sm:$0xf]
  %v57 = vld [vmem:[%s55 + $0x8] sm:$0xf]
  %v58 = vld [vmem:[%s55 + $0x10] sm:$0xf]
  %v59 = vld [vmem:[%s55 + $0x18] sm:$0xf]
  %s60 = scalar_lea.vmem %s0, 360
  %v61 = vld [vmem:[%s60] sm:$0xf]
  %v62 = vld [vmem:[%s60 + $0x8] sm:$0xf]
  %v63 = vld [vmem:[%s60 + $0x10] sm:$0xf]
  %v64 = vld [vmem:[%s60 + $0x18] sm:$0xf]
  %v65 = vadd.f32 %v56, %v61
  %v66 = vadd.f32 %v57, %v62
  %v67 = vadd.f32 %v58, %v63
  %v68 = vadd.f32 %v59, %v64
  %s69 = scalar_lea.vmem %s0, 160
  %v70 = vld [vmem:[%s69] sm:$0xf]
  %v71 = vld [vmem:[%s69 + $0x8] sm:$0xf]
  %v72 = vld [vmem:[%s69 + $0x10] sm:$0xf]
  %v73 = vld [vmem:[%s69 + $0x18] sm:$0xf]
  %s74 = scalar_lea.vmem %s0, 240
  %v75 = vld [vmem:[%s74] sm:$0xf]
  %v76 = vld [vmem:[%s74 + $0x8] sm:$0xf]
  %v77 = vld [vmem:[%s74 + $0x10] sm:$0xf]
  %v78 = vld [vmem:[%s74 + $0x18] sm:$0xf]
  %v79 = vadd.f32 %v70, %v75
  %v80 = vadd.f32 %v71, %v76
  %v81 = vadd.f32 %v72, %v77
  %v82 = vadd.f32 %v73, %v78
  %v83 = vadd.f32 %v65, %v79
  %v84 = vadd.f32 %v66, %v80
  %v85 = vadd.f32 %v67, %v81
  %v86 = vadd.f32 %v68, %v82
  %s87 = scalar_lea.vmem %s0, 200
  %v88 = vld [vmem:[%s87] sm:$0xf]
  %v89 = vld [vmem:[%s87 + $0x8] sm:$0xf]
  %v90 = vld [vmem:[%s87 + $0x10] sm:$0xf]
  %v91 = vld [vmem:[%s87 + $0x18] sm:$0xf]
  %v92 = vmul.f32 %v51, 0.07511361
  %v93 = vmul.f32 %v52, 0.07511361
  %v94 = vmul.f32 %v53, 0.07511361
  %v95 = vmul.f32 %v54, 0.07511361
  %v96 = vmul.f32 %v83, 0.123841405
  %v97 = vmul.f32 %v84, 0.123841405
  %v98 = vmul.f32 %v85, 0.123841405
  %v99 = vmul.f32 %v86, 0.123841405
  %v100 = vadd.f32 %v92, %v96
  %v101 = vadd.f32 %v93, %v97
  %v102 = vadd.f32 %v94, %v98
  %v103 = vadd.f32 %v95, %v99
  %v104 = vmul.f32 %v88, 0.20417996
  %v105 = vmul.f32 %v89, 0.20417996
  %v106 = vmul.f32 %v90, 0.20417996
  %v107 = vmul.f32 %v91, 0.20417996
  %v108 = vadd.f32 %v100, %v104
  %v109 = vadd.f32 %v101, %v105
  %v110 = vadd.f32 %v102, %v106
  %v111 = vadd.f32 %v103, %v107
  %s112 = scalar_lea.vmem %s1, 120
  %113 = vst [vmem:[%s112] sm:$0xf] %v108
  %114 = vst [vmem:[%s112 + $0x8] sm:$0xf] %v109
  %115 = vst [vmem:[%s112 + $0x10] sm:$0xf] %v110
  %116 = vst [vmem:[%s112 + $0x18] sm:$0xf] %v111
  %v117 = vld [vmem:[%s0 + $0x1] sm:$0xf]
  %v118 = vld [vmem:[%s0 + $0x9] sm:$0xf]
  %v119 = vld [vmem:[%s0 + $0x11] sm:$0xf]
  %v120 = vld [vmem:[%s0 + $0x19] sm:$0xf]
  %v121 = vadd.f32 %v29, %v117
  %v122 = vadd.f32 %v30, %v118
  %v123 = vadd.f32 %v31, %v119
  %v124 = vadd.f32 %v32, %v120
  %v125 = vld [vmem:[%s37 + $0x1] sm:$0xf]
  %v126 = vld [vmem:[%s37 + $0x9] sm:$0xf]
  %v127 = vld [vmem:[%s37 + $0x11] sm:$0xf]
  %v128 = vld [vmem:[%s37 + $0x19] sm:$0xf]
  %v129 = vadd.f32 %v43, %v125
  %v130 = vadd.f32 %v44, %v126
  %v131 = vadd.f32 %v45, %v127
  %v132 = vadd.f32 %v46, %v128
  %v133 = vadd.f32 %v121, %v129
  %v134 = vadd.f32 %v122, %v130
  %v135 = vadd.f32 %v123, %v131
  %v136 = vadd.f32 %v124, %v132
  %s137 = scalar_lea.vmem %s0, 120
  %v138 = vld [vmem:[%s137] sm:$0xf]
  %v139 = vld [vmem:[%s137 + $0x8] sm:$0xf]
  %v140 = vld [vmem:[%s137 + $0x10] sm:$0xf]
  %v141 = vld [vmem:[%s137 + $0x18] sm:$0xf]
  %s142 = scalar_lea.vmem %s0, 440
  %v143 = vld [vmem:[%s142] sm:$0xf]
  %v144 = vld [vmem:[%s142 + $0x8] sm:$0xf]
  %v145 = vld [vmem:[%s142 + $0x10] sm:$0xf]
  %v146 = vld [vmem:[%s142 + $0x18] sm:$0xf]
  %v147 = vadd.f32 %v138, %v143
  %v148 = vadd.f32 %v139, %v144
  %v149 = vadd.f32 %v140, %v145
  %v150 = vadd.f32 %v141, %v146
  %v151 = vld [vmem:[%s69 + $0x1] sm:$0xf]
  %v152 = vld [vmem:[%s69 + $0x9] sm:$0xf]
  %v153 = vld [vmem:[%s69 + $0x11] sm:$0xf]
  %v154 = vld [vmem:[%s69 + $0x19] sm:$0xf]
  %v155 = vadd.f32 %v75, %v151
  %v156 = vadd.f32 %v76, %v152
  %v157 = vadd.f32 %v77, %v153
  %v158 = vadd.f32 %v78, %v154
  %v159 = vadd.f32 %v147, %v155
  %v160 = vadd.f32 %v148, %v156
  %v161 = vadd.f32 %v149, %v157
  %v162 = vadd.f32 %v150, %v158
  %s163 = scalar_lea.vmem %s0, 280
  %v164 = vld [vmem:[%s163] sm:$0xf]
  %v165 = vld [vmem:[%s163 + $0x8] sm:$0xf]
  %v166 = vld [vmem:[%s163 + $0x10] sm:$0xf]
  %v167 = vld [vmem:[%s163 + $0x18] sm:$0xf]
  %v168 = vmul.f32 %v133, 0.07511361
  %v169 = vmul.f32 %v134, 0.07511361
  %v170 = vmul.f32 %v135, 0.07511361
  %v171 = vmul.f32 %v136, 0.07511361
  %v172 = vmul.f32 %v159, 0.123841405
  %v173 = vmul.f32 %v160, 0.123841405
  %v174 = vmul.f32 %v161, 0.123841405
  %v175 = vmul.f32 %v162, 0.123841405
  %v176 = vadd.f32 %v168, %v172
  %v177 = vadd.f32 %v169, %v173
  %v178 = vadd.f32 %v170, %v174
  %v179 = vadd.f32 %v171, %v175
  %v180 = vmul.f32 %v164, 0.20417996
  %v181 = vmul.f32 %v165, 0.20417996
  %v182 = vmul.f32 %v166, 0.20417996
  %v183 = vmul.f32 %v167, 0.20417996
  %v184 = vadd.f32 %v176, %v180
  %v185 = vadd.f32 %v177, %v181
  %v186 = vadd.f32 %v178, %v182
  %v187 = vadd.f32 %v179, %v183
  %188 = vst [vmem:[%s18 + $0x1] sm:$0xf] %v184
  %189 = vst [vmem:[%s18 + $0x9] sm:$0xf] %v185
  %190 = vst [vmem:[%s18 + $0x11] sm:$0xf] %v186
  %191 = vst [vmem:[%s18 + $0x19] sm:$0xf] %v187
  %s192 = scalar_lea.vmem %s0, 8
  %v193 = vld [vmem:[%s192] sm:$0xf]
  %v194 = vld [vmem:[%s192 + $0x8] sm:$0xf]
  %v195 = vld [vmem:[%s192 + $0x10] sm:$0xf]
  %v196 = vld [vmem:[%s192 + $0x18] sm:$0xf]
  %s197 = scalar_lea.vmem %s0, 88
  %v198 = vld [vmem:[%s197] sm:$0xf]
  %v199 = vld [vmem:[%s197 + $0x8] sm:$0xf]
  %v200 = vld [vmem:[%s197 + $0x10] sm:$0xf]
  %v201 = vld [vmem:[%s197 + $0x18] sm:$0xf]
  %v202 = vadd.f32 %v193, %v198
  %v203 = vadd.f32 %v194, %v199
  %v204 = vadd.f32 %v195, %v200
  %v205 = vadd.f32 %v196, %v201
  %v206 = vadd.f32 %v47, %v202
  %v207 = vadd.f32 %v48, %v203
  %v208 = vadd.f32 %v49, %v204
  %v209 = vadd.f32 %v50, %v205
  %s210 = scalar_lea.vmem %s0, 48
  %v211 = vld [vmem:[%s210] sm:$0xf]
  %v212 = vld [vmem:[%s210 + $0x8] sm:$0xf]
  %v213 = vld [vmem:[%s210 + $0x10] sm:$0xf]
  %v214 = vld [vmem:[%s210 + $0x18] sm:$0xf]
  %v215 = vadd.f32 %v61, %v211
  %v216 = vadd.f32 %v62, %v212
  %v217 = vadd.f32 %v63, %v213
  %v218 = vadd.f32 %v64, %v214
  %s219 = scalar_lea.vmem %s0, 480
  %v220 = vld [vmem:[%s219] sm:$0xf]
  %v221 = vld [vmem:[%s219 + $0x8] sm:$0xf]
  %v222 = vld [vmem:[%s219 + $0x10] sm:$0xf]
  %v223 = vld [vmem:[%s219 + $0x18] sm:$0xf]
  %s224 = scalar_lea.vmem %s0, 560
  %v225 = vld [vmem:[%s224] sm:$0xf]
  %v226 = vld [vmem:[%s224 + $0x8] sm:$0xf]
  %v227 = vld [vmem:[%s224 + $0x10] sm:$0xf]
  %v228 = vld [vmem:[%s224 + $0x18] sm:$0xf]
  %v229 = vadd.f32 %v220, %v225
  %v230 = vadd.f32 %v221, %v226
  %v231 = vadd.f32 %v222, %v227
  %v232 = vadd.f32 %v223, %v228
  %v233 = vadd.f32 %v215, %v229
  %v234 = vadd.f32 %v216, %v230
  %v235 = vadd.f32 %v217, %v231
  %v236 = vadd.f32 %v218, %v232
  %s237 = scalar_lea.vmem %s0, 520
  %v238 = vld [vmem:[%s237] sm:$0xf]
  %v239 = vld [vmem:[%s237 + $0x8] sm:$0xf]
  %v240 = vld [vmem:[%s237 + $0x10] sm:$0xf]
  %v241 = vld [vmem:[%s237 + $0x18] sm:$0xf]
  %v242 = vmul.f32 %v206, 0.07511361
  %v243 = vmul.f32 %v207, 0.07511361
  %v244 = vmul.f32 %v208, 0.07511361
  %v245 = vmul.f32 %v209, 0.07511361
  %v246 = vmul.f32 %v233, 0.123841405
  %v247 = vmul.f32 %v234, 0.123841405
  %v248 = vmul.f32 %v235, 0.123841405
  %v249 = vmul.f32 %v236, 0.123841405
  %v250 = vadd.f32 %v242, %v246
  %v251 = vadd.f32 %v243, %v247
  %v252 = vadd.f32 %v244, %v248
  %v253 = vadd.f32 %v245, %v249
  %v254 = vmul.f32 %v238, 0.20417996
  %v255 = vmul.f32 %v239, 0.20417996
  %v256 = vmul.f32 %v240, 0.20417996
  %v257 = vmul.f32 %v241, 0.20417996
  %v258 = vadd.f32 %v250, %v254
  %v259 = vadd.f32 %v251, %v255
  %v260 = vadd.f32 %v252, %v256
  %v261 = vadd.f32 %v253, %v257
  %s262 = scalar_lea.vmem %s1, 48
  %263 = vst [vmem:[%s262] sm:$0xf] %v258
  %264 = vst [vmem:[%s262 + $0x8] sm:$0xf] %v259
  %265 = vst [vmem:[%s262 + $0x10] sm:$0xf] %v260
  %266 = vst [vmem:[%s262 + $0x18] sm:$0xf] %v261
  %v267 = vld [vmem:[%s192 + $0x1] sm:$0xf]
  %v268 = vld [vmem:[%s192 + $0x9] sm:$0xf]
  %v269 = vld [vmem:[%s192 + $0x11] sm:$0xf]
  %v270 = vld [vmem:[%s192 + $0x19] sm:$0xf]
  %v271 = vadd.f32 %v198, %v267
  %v272 = vadd.f32 %v199, %v268
  %v273 = vadd.f32 %v200, %v269
  %v274 = vadd.f32 %v201, %v270
  %v275 = vadd.f32 %v129, %v271
  %v276 = vadd.f32 %v130, %v272
  %v277 = vadd.f32 %v131, %v273
  %v278 = vadd.f32 %v132, %v274
  %s279 = scalar_lea.vmem %s0, 128
  %v280 = vld [vmem:[%s279] sm:$0xf]
  %v281 = vld [vmem:[%s279 + $0x8] sm:$0xf]
  %v282 = vld [vmem:[%s279 + $0x10] sm:$0xf]
  %v283 = vld [vmem:[%s279 + $0x18] sm:$0xf]
  %v284 = vadd.f32 %v143, %v280
  %v285 = vadd.f32 %v144, %v281
  %v286 = vadd.f32 %v145, %v282
  %v287 = vadd.f32 %v146, %v283
  %v288 = vld [vmem:[%s219 + $0x1] sm:$0xf]
  %v289 = vld [vmem:[%s219 + $0x9] sm:$0xf]
  %v290 = vld [vmem:[%s219 + $0x11] sm:$0xf]
  %v291 = vld [vmem:[%s219 + $0x19] sm:$0xf]
  %v292 = vadd.f32 %v225, %v288
  %v293 = vadd.f32 %v226, %v289
  %v294 = vadd.f32 %v227, %v290
  %v295 = vadd.f32 %v228, %v291
  %v296 = vadd.f32 %v284, %v292
  %v297 = vadd.f32 %v285, %v293
  %v298 = vadd.f32 %v286, %v294
  %v299 = vadd.f32 %v287, %v295
  %s300 = scalar_lea.vmem %s0, 600
  %v301 = vld [vmem:[%s300] sm:$0xf]
  %v302 = vld [vmem:[%s300 + $0x8] sm:$0xf]
  %v303 = vld [vmem:[%s300 + $0x10] sm:$0xf]
  %v304 = vld [vmem:[%s300 + $0x18] sm:$0xf]
  %v305 = vmul.f32 %v275, 0.07511361
  %v306 = vmul.f32 %v276, 0.07511361
  %v307 = vmul.f32 %v277, 0.07511361
  %v308 = vmul.f32 %v278, 0.07511361
  %v309 = vmul.f32 %v296, 0.123841405
  %v310 = vmul.f32 %v297, 0.123841405
  %v311 = vmul.f32 %v298, 0.123841405
  %v312 = vmul.f32 %v299, 0.123841405
  %v313 = vadd.f32 %v305, %v309
  %v314 = vadd.f32 %v306, %v310
  %v315 = vadd.f32 %v307, %v311
  %v316 = vadd.f32 %v308, %v312
  %v317 = vmul.f32 %v301, 0.20417996
  %v318 = vmul.f32 %v302, 0.20417996
  %v319 = vmul.f32 %v303, 0.20417996
  %v320 = vmul.f32 %v304, 0.20417996
  %v321 = vadd.f32 %v313, %v317
  %v322 = vadd.f32 %v314, %v318
  %v323 = vadd.f32 %v315, %v319
  %v324 = vadd.f32 %v316, %v320
  %s325 = scalar_lea.vmem %s1, 8
  %326 = vst [vmem:[%s325 + $0x1] sm:$0xf] %v321
  %327 = vst [vmem:[%s325 + $0x9] sm:$0xf] %v322
  %328 = vst [vmem:[%s325 + $0x11] sm:$0xf] %v323
  %329 = vst [vmem:[%s325 + $0x19] sm:$0xf] %v324
  %v330 = vld [vmem:[%s1] sm:$0xf]
  %v331 = vld [vmem:[%s1 + $0x8] sm:$0xf]
  %v332 = vld [vmem:[%s1 + $0x10] sm:$0xf]
  %v333 = vld [vmem:[%s1 + $0x18] sm:$0xf]
  %v334 = vld [vmem:[%s11] sm:$0xf]
  %v335 = vld [vmem:[%s11 + $0x8] sm:$0xf]
  %v336 = vld [vmem:[%s11 + $0x10] sm:$0xf]
  %v337 = vld [vmem:[%s11 + $0x18] sm:$0xf]
  %v338 = vld [vmem:[%s1 + $0x1] sm:$0xf]
  %v339 = vld [vmem:[%s1 + $0x9] sm:$0xf]
  %v340 = vld [vmem:[%s1 + $0x11] sm:$0xf]
  %v341 = vld [vmem:[%s1 + $0x19] sm:$0xf]
  %v342 = vld [vmem:[%s18] sm:$0xf]
  %v343 = vld [vmem:[%s18 + $0x8] sm:$0xf]
  %v344 = vld [vmem:[%s18 + $0x10] sm:$0xf]
  %v345 = vld [vmem:[%s18 + $0x18] sm:$0xf]
  %v346 = vld [vmem:[%s112] sm:$0xf]
  %v347 = vld [vmem:[%s112 + $0x8] sm:$0xf]
  %v348 = vld [vmem:[%s112 + $0x10] sm:$0xf]
  %v349 = vld [vmem:[%s112 + $0x18] sm:$0xf]
  %v350 = vld [vmem:[%s18 + $0x1] sm:$0xf]
  %v351 = vld [vmem:[%s18 + $0x9] sm:$0xf]
  %v352 = vld [vmem:[%s18 + $0x11] sm:$0xf]
  %v353 = vld [vmem:[%s18 + $0x19] sm:$0xf]
  %v354 = vld [vmem:[%s325] sm:$0xf]
  %v355 = vld [vmem:[%s325 + $0x8] sm:$0xf]
  %v356 = vld [vmem:[%s325 + $0x10] sm:$0xf]
  %v357 = vld [vmem:[%s325 + $0x18] sm:$0xf]
  %v358 = vld [vmem:[%s262] sm:$0xf]
  %v359 = vld [vmem:[%s262 + $0x8] sm:$0xf]
  %v360 = vld [vmem:[%s262 + $0x10] sm:$0xf]
  %v361 = vld [vmem:[%s262 + $0x18] sm:$0xf]
  %v362 = vld [vmem:[%s325 + $0x1] sm:$0xf]
  %v363 = vld [vmem:[%s325 + $0x9] sm:$0xf]
  %v364 = vld [vmem:[%s325 + $0x11] sm:$0xf]
  %v365 = vld [vmem:[%s325 + $0x19] sm:$0xf]
  %v366 = vadd.f32 %v334, %v358
  %v367 = vadd.f32 %v335, %v359
  %v368 = vadd.f32 %v336, %v360
  %v369 = vadd.f32 %v337, %v361
  %v370 = vadd.f32 %v342, %v350
  %v371 = vadd.f32 %v343, %v351
  %v372 = vadd.f32 %v344, %v352
  %v373 = vadd.f32 %v345, %v353
  %v374 = vadd.f32 %v366, %v370
  %v375 = vadd.f32 %v367, %v371
  %v376 = vadd.f32 %v368, %v372
  %v377 = vadd.f32 %v369, %v373
  %v378 = vadd.f32 %v330, %v338
  %v379 = vadd.f32 %v331, %v339
  %v380 = vadd.f32 %v332, %v340
  %v381 = vadd.f32 %v333, %v341
  %v382 = vadd.f32 %v354, %v362
  %v383 = vadd.f32 %v355, %v363
  %v384 = vadd.f32 %v356, %v364
  %v385 = vadd.f32 %v357, %v365
  %v386 = vadd.f32 %v378, %v382
  %v387 = vadd.f32 %v379, %v383
  %v388 = vadd.f32 %v380, %v384
  %v389 = vadd.f32 %v381, %v385
  %v390 = vmul.f32 %v346, 4.0
  %v391 = vmul.f32 %v347, 4.0
  %v392 = vmul.f32 %v348, 4.0
  %v393 = vmul.f32 %v349, 4.0
  %v394 = vsub.f32 %v374, %v390
  %v395 = vsub.f32 %v375, %v391
  %v396 = vsub.f32 %v376, %v392
  %v397 = vsub.f32 %v377, %v393
  %398 = vst [vmem:[%s2] sm:$0xf] %v394
  %399 = vst [vmem:[%s2 + $0x4] sm:$0xf] %v395
  %400 = vst [vmem:[%s2 + $0x8] sm:$0xf] %v396
  %401 = vst [vmem:[%s2 + $0xc] sm:$0xf] %v397
  %v402 = vadd.f32 %v374, %v386
  %v403 = vadd.f32 %v375, %v387
  %v404 = vadd.f32 %v376, %v388
  %v405 = vadd.f32 %v377, %v389
  %v406 = vadd.f32 %v390, %v390
  %v407 = vadd.f32 %v391, %v391
  %v408 = vadd.f32 %v392, %v392
  %v409 = vadd.f32 %v393, %v393
  %v410 = vsub.f32 %v402, %v406
  %v411 = vsub.f32 %v403, %v407
  %v412 = vsub.f32 %v404, %v408
  %v413 = vsub.f32 %v405, %v409
  %s414 = scalar_lea.vmem %s2, 16
  %415 = vst [vmem:[%s414] sm:$0xf] %v410
  %416 = vst [vmem:[%s414 + $0x4] sm:$0xf] %v411
  %417 = vst [vmem:[%s414 + $0x8] sm:$0xf] %v412
  %418 = vst [vmem:[%s414 + $0xc] sm:$0xf] %v413
  %v419 = vsub.f32 %v338, %v330
  %v420 = vsub.f32 %v339, %v331
  %v421 = vsub.f32 %v340, %v332
  %v422 = vsub.f32 %v341, %v333
  %v423 = vsub.f32 %v350, %v342
  %v424 = vsub.f32 %v351, %v343
  %v425 = vsub.f32 %v352, %v344
  %v426 = vsub.f32 %v353, %v345
  %v427 = vmul.f32 %v423, 2.0
  %v428 = vmul.f32 %v424, 2.0
  %v429 = vmul.f32 %v425, 2.0
  %v430 = vmul.f32 %v426, 2.0
  %v431 = vadd.f32 %v419, %v427
  %v432 = vadd.f32 %v420, %v428
  %v433 = vadd.f32 %v421, %v429
  %v434 = vadd.f32 %v422, %v430
  %v435 = vsub.f32 %v362, %v354
  %v436 = vsub.f32 %v363, %v355
  %v437 = vsub.f32 %v364, %v356
  %v438 = vsub.f32 %v365, %v357
  %v439 = vadd.f32 %v431, %v435
  %v440 = vadd.f32 %v432, %v436
  %v441 = vadd.f32 %v433, %v437
  %v442 = vadd.f32 %v434, %v438
  %s443 = scalar_lea.vmem %s2, 32
  %444 = vst [vmem:[%s443] sm:$0xf] %v439
  %445 = vst [vmem:[%s443 + $0x4] sm:$0xf] %v440
  %446 = vst [vmem:[%s443 + $0x8] sm:$0xf] %v441
  %447 = vst [vmem:[%s443 + $0xc] sm:$0xf] %v442
  %v448 = vsub.f32 %v354, %v330
  %v449 = vsub.f32 %v355, %v331
  %v450 = vsub.f32 %v356, %v332
  %v451 = vsub.f32 %v357, %v333
  %v452 = vsub.f32 %v358, %v334
  %v453 = vsub.f32 %v359, %v335
  %v454 = vsub.f32 %v360, %v336
  %v455 = vsub.f32 %v361, %v337
  %v456 = vmul.f32 %v452, 2.0
  %v457 = vmul.f32 %v453, 2.0
  %v458 = vmul.f32 %v454, 2.0
  %v459 = vmul.f32 %v455, 2.0
  %v460 = vadd.f32 %v448, %v456
  %v461 = vadd.f32 %v449, %v457
  %v462 = vadd.f32 %v450, %v458
  %v463 = vadd.f32 %v451, %v459
  %v464 = vsub.f32 %v362, %v338
  %v465 = vsub.f32 %v363, %v339
  %v466 = vsub.f32 %v364, %v340
  %v467 = vsub.f32 %v365, %v341
  %v468 = vadd.f32 %v460, %v464
  %v469 = vadd.f32 %v461, %v465
  %v470 = vadd.f32 %v462, %v466
  %v471 = vadd.f32 %v463, %v467
  %s472 = scalar_lea.vmem %s2, 48
  %473 = vst [vmem:[%s472] sm:$0xf] %v468
  %474 = vst [vmem:[%s472 + $0x4] sm:$0xf] %v469
  %475 = vst [vmem:[%s472 + $0x8] sm:$0xf] %v470
  %476 = vst [vmem:[%s472 + $0xc] sm:$0xf] %v471
  // Predicated region
  $region6: #{lap_sob_gaus_pool.1} parent=0 // pred_check
    _
  $region7: #{lap_sob_gaus_pool.1} parent=0 // pred_check_branch
    %478 = sbr.rel (0) target = $region9
  $region8: #{lap_sob_gaus_pool.1} parent=0 // pred_region
    _
  $region9: #{lap_sob_gaus_pool.1} parent=0 // pred_fallthru
    _
  // Predicated region
  $region10: #{lap_sob_gaus_pool.1} parent=0 // pred_check
    _
  $region11: #{lap_sob_gaus_pool.1} parent=0 // pred_check_branch
    %480 = sbr.rel (0) target = $region13
  $region12: #{lap_sob_gaus_pool.1} parent=0 // pred_region
    _
  $region13: #{lap_sob_gaus_pool.1} parent=0 // pred_fallthru
    _
  // Predicated region
  $region14: #{lap_sob_gaus_pool.1} parent=0 // pred_check
    _
  $region15: #{lap_sob_gaus_pool.1} parent=0 // pred_check_branch
    %482 = sbr.rel (0) target = $region17
  $region16: #{lap_sob_gaus_pool.1} parent=0 // pred_region
    _
  $region17: #{lap_sob_gaus_pool.1} parent=0 // pred_fallthru
    _
  // Predicated region
  $region18: #{lap_sob_gaus_pool.1} parent=0 // pred_check
    _
  $region19: #{lap_sob_gaus_pool.1} parent=0 // pred_check_branch
    %484 = sbr.rel (0) target = $region21
  $region20: #{lap_sob_gaus_pool.1} parent=0 // pred_region
    _
  $region21: #{lap_sob_gaus_pool.1} parent=0 // pred_fallthru
    _

</llo_original>
